<compile_context>
chip_gen: v7x
topology: tpu7x:2x2x1
jax: 0.10.0
libtpu: 0.0.40
codegen_flags: <defaults>
</compile_context>

<pallas_src>
import functools

import jax
import jax.numpy as jnp
import numpy as np
from jax import lax
from jax.experimental import pallas as pl
from jax.experimental.pallas import tpu as pltpu


def _round_up(a, b):
    return (a + b - 1) // b * b


def _dilated_block_kernel(*refs, dilation, tile_t, has_halo):
    """One (batch, time-tile) step: dilated conv3 (folded 1x1) + residual + LeakyReLU."""
    d = dilation
    TT = tile_t

    if has_halo:
        x_ref, hlo_ref, hhi_ref, w_ref, b_ref, out_ref, halo_ref = refs
    else:
        x_ref, w_ref, b_ref, out_ref = refs

    C = x_ref.shape[1]
    x = x_ref[0]                                     # (C, TT) resident activation tile

    # Shifted taps via XLU rotations; the d wrapped columns on each side are replaced
    # by tile halos (real neighbor data, or zeros at the true sequence ends).
    lane = lax.broadcasted_iota(jnp.int32, (C, TT), 1)
    shift_lo = d % TT                                # tap_lo[t] = x_global[t - d]
    shift_hi = (TT - d) % TT                         # tap_hi[t] = x_global[t + d]
    rolled_lo = pltpu.roll(x, shift_lo, 1)
    rolled_hi = pltpu.roll(x, shift_hi, 1)

    if has_halo:
        # Stage both halos into one persistent (C, TT) scratch: left halo occupies
        # lanes [0, d), right halo lanes [TT - d, TT); only those lanes are ever read.
        halo_ref[:, 0:d] = hlo_ref[0, 0]
        halo_ref[:, TT - d:TT] = hhi_ref[0, 0]
        halo = halo_ref[...]
        tap_lo = jnp.where(lane < d, halo, rolled_lo)
        tap_hi = jnp.where(lane >= TT - d, halo, rolled_hi)
    else:
        # Single time tile: out-of-range taps are exactly the conv's zero padding.
        tap_lo = jnp.where(lane < d, 0.0, rolled_lo)
        tap_hi = jnp.where(lane >= TT - d, 0.0, rolled_hi)

    # Folded conv taps: three back-to-back MXU dots into a single f32 accumulator.
    acc = jnp.dot(w_ref[0], tap_lo, preferred_element_type=jnp.float32)
    acc = acc + jnp.dot(w_ref[1], x, preferred_element_type=jnp.float32)
    acc = acc + jnp.dot(w_ref[2], tap_hi, preferred_element_type=jnp.float32)

    # Folded bias + residual (from the resident input block) + LeakyReLU(0.2).
    v = acc + b_ref[...] + x
    out_ref[0] = jnp.where(v >= 0, v, 0.2 * v).astype(out_ref.dtype)


def dilated_block(x, w_dil, b_dil, w_1x1, b_1x1, dilation, *, time_tile=2048):
    """Fused DilatedBlock forward.

    x: (B, C, T) f32.  w_dil: (C, C, 3).  b_dil: (C,).  w_1x1: (C, C, 1).  b_1x1: (C,).
    time_tile: target time-tile length (rounded up to a multiple of 128).  The 2048
    default keeps the per-step footprint well inside v7x's 64 MiB VMEM; raise to
    4096-8192 on v5e/v6e for very long sequences if desired.
    """
    B, C, T = x.shape
    d = int(dilation)
    dtype = x.dtype

    # ---- Fold the 1x1 conv into the dilated taps (exact: no nonlinearity between) ----
    hi = lax.Precision.HIGHEST
    wp = w_1x1[:, :, 0]                                              # (C, C)
    w_folded = jnp.einsum("oc,cik->koi", wp, w_dil, precision=hi)    # (3, C, C)
    b_folded = jnp.dot(wp, b_dil, precision=hi) + b_1x1              # (C,)

    # ---- Pick a lane-dense time tile and (8, 128)-aligned padded shapes ----
    Cp = _round_up(C, 8)
    TT = _round_up(min(time_tile, T), 128)
    if -(-T // TT) > 1:                      # will tile time: halos must fit in a tile
        TT = max(TT, _round_up(2 * d, 128))
    nT = -(-T // TT)
    Tp = nT * TT
    if nT > 1:
        assert 2 * d <= TT, "dilation too large for the chosen time tile"

    if (Cp, Tp) != (C, T):
        x_in = jnp.pad(x, ((0, 0), (0, Cp - C), (0, Tp - T)))
    else:
        x_in = x
    if Cp != C:
        w_folded = jnp.pad(w_folded, ((0, 0), (0, Cp - C), (0, Cp - C)))
        b_folded = jnp.pad(b_folded, ((0, Cp - C),))
    b_folded = b_folded.reshape(Cp, 1)

    # ---- Operands / specs (halos only exist when the time axis is actually tiled) ----
    args = [x_in]
    in_specs = [pl.BlockSpec((1, Cp, TT), lambda b, t: (b, 0, t))]
    scratch_shapes = []
    if nT > 1:
        xr = x_in.reshape(B, Cp, nT, TT)
        zeros_strip = jnp.zeros((B, Cp, 1, d), dtype)
        halo_lo = jnp.concatenate([zeros_strip, xr[:, :, :-1, TT - d:]], axis=2)
        halo_hi = jnp.concatenate([xr[:, :, 1:, :d], zeros_strip], axis=2)
        halo_lo = jnp.transpose(halo_lo, (0, 2, 1, 3))               # (B, nT, Cp, d)
        halo_hi = jnp.transpose(halo_hi, (0, 2, 1, 3))
        args += [halo_lo, halo_hi]
        in_specs += [pl.BlockSpec((1, 1, Cp, d), lambda b, t: (b, t, 0, 0)),
                     pl.BlockSpec((1, 1, Cp, d), lambda b, t: (b, t, 0, 0))]
        scratch_shapes = [pltpu.VMEM((Cp, TT), dtype)]               # halo staging
    args += [w_folded, b_folded]
    in_specs += [pl.BlockSpec((3, Cp, Cp), lambda b, t: (0, 0, 0)),   # resident weights
                 pl.BlockSpec((Cp, 1), lambda b, t: (0, 0))]          # resident bias

    # ---- VMEM budget: double-buffered in/out blocks + resident params + scratch ----
    blk = Cp * TT * 4
    est = 4 * blk + 2 * (3 * Cp * Cp * 4) + 2 * (Cp * 128 * 4)
    if nT > 1:
        est += blk + 4 * (Cp * 128 * 4)
    vmem_limit = int(min(max(est + (8 << 20), 32 << 20), 120 << 20))

    kernel = functools.partial(_dilated_block_kernel, dilation=d, tile_t=TT,
                               has_halo=(nT > 1))

    out_p = pl.pallas_call(
        kernel,
        out_shape=jax.ShapeDtypeStruct((B, Cp, Tp), dtype),
        grid_spec=pltpu.PrefetchScalarGridSpec(
            num_scalar_prefetch=0,
            grid=(B, nT),
            in_specs=in_specs,
            out_specs=pl.BlockSpec((1, Cp, TT), lambda b, t: (b, 0, t)),
            scratch_shapes=scratch_shapes,
        ),
        compiler_params=pltpu.CompilerParams(
            dimension_semantics=("parallel", "parallel"),
            vmem_limit_bytes=vmem_limit),
    )(*args)

    if (Cp, Tp) != (C, T):
        out_p = out_p[:, :C, :T]
    return out_p


def _reference(x, w_dil, b_dil, w_1x1, b_1x1, dilation):
    d = int(dilation)
    dn = ("NCH", "OIH", "NCH")
    hi = lax.Precision.HIGHEST
    y = lax.conv_general_dilated(
        x, w_dil, window_strides=(1,), padding=[(d, d)],
        rhs_dilation=(d,), dimension_numbers=dn, precision=hi) + b_dil[None, :, None]
    z = lax.conv_general_dilated(
        y, w_1x1, window_strides=(1,), padding=[(0, 0)],
        dimension_numbers=dn, precision=hi) + b_1x1[None, :, None]
    v = z + x
    return jnp.where(v >= 0, v, 0.2 * v)


if __name__ == "__main__":
    def make_params(key, C):
        k_wd, k_bd, k_w1, k_b1 = jax.random.split(key, 4)
        lim_d = 1.0 / np.sqrt(C * 3)
        w_dil = jax.random.uniform(k_wd, (C, C, 3), jnp.float32, -lim_d, lim_d)
        b_dil = jax.random.uniform(k_bd, (C,), jnp.float32, -lim_d, lim_d)
        lim_1 = 1.0 / np.sqrt(C)
        w_1x1 = jax.random.uniform(k_w1, (C, C, 1), jnp.float32, -lim_1, lim_1)
        b_1x1 = jax.random.uniform(k_b1, (C,), jnp.float32, -lim_1, lim_1)
        return w_dil, b_dil, w_1x1, b_1x1

    key = jax.random.PRNGKey(0)

    # Case 1: module-scale shapes (single time tile, no halos).
    k_x, k_p, key = jax.random.split(key, 3)
    B, C, T, dilation = 2, 4, 16, 2
    x = jax.random.normal(k_x, (B, C, T), dtype=jnp.float32)
    params = make_params(k_p, C)
    out = jax.block_until_ready(dilated_block(x, *params, dilation))
    ref = jax.block_until_ready(_reference(x, *params, dilation))
    np.testing.assert_allclose(np.asarray(out), np.asarray(ref), rtol=1e-4, atol=1e-4)

    # Case 2: exercises the time-tiled path (3 tiles of 128 lanes + real halos).
    k_x, k_p, key = jax.random.split(key, 3)
    B, C, T, dilation = 2, 8, 300, 3
    x = jax.random.normal(k_x, (B, C, T), dtype=jnp.float32)
    params = make_params(k_p, C)
    out = jax.block_until_ready(dilated_block(x, *params, dilation, time_tile=128))
    ref = jax.block_until_ready(_reference(x, *params, dilation))
    np.testing.assert_allclose(np.asarray(out), np.asarray(ref), rtol=1e-4, atol=1e-4)

    print("KERNEL_OK")
</pallas_src>

<mosaic_0001>
module attributes {stable_mosaic.version = 11 : i64} {
  func.func @_dilated_block_kernel(%arg0: i32, %arg1: i32, %arg2: memref<1x8x128xf32, #tpu.memory_space<vmem>>, %arg3: memref<3x8x8xf32, #tpu.memory_space<vmem>>, %arg4: memref<8x1xf32, #tpu.memory_space<vmem>>, %arg5: memref<1x8x128xf32, #tpu.memory_space<vmem>>) attributes {dimension_semantics = [#tpu.dimension_semantics<parallel>, #tpu.dimension_semantics<parallel>], iteration_bounds = array<i64: 2, 1>, scalar_prefetch = 0 : i64, scratch_operands = 0 : i64, tpu.core_type = #tpu.core_type<tc>, window_params = [{transform_indices = @transform_0, window_bounds = array<i64: 1, 8, 128>}, {pipeline_mode = #tpu.pipeline_mode<synchronous>, transform_indices = @transform_1, window_bounds = array<i64: 3, 8, 8>}, {pipeline_mode = #tpu.pipeline_mode<synchronous>, transform_indices = @transform_2, window_bounds = array<i64: 8, 1>}, {transform_indices = @transform_3, window_bounds = array<i64: 1, 8, 128>}]} {
    %c0 = arith.constant 0 : index
    %c0_0 = arith.constant 0 : index
    %c0_1 = arith.constant 0 : index
    %0 = vector.load %arg2[%c0, %c0_0, %c0_1] : memref<1x8x128xf32, #tpu.memory_space<vmem>>, vector<1x8x128xf32>
    %1 = vector.shape_cast %0 : vector<1x8x128xf32> to vector<8x128xf32>
    %2 = tpu.iota {dimensions = array<i32: 1>} : vector<8x128xi32>
    %c2_i32 = arith.constant 2 : i32
    %3 = tpu.dynamic_rotate %1 by %c2_i32 dim 1 : vector<8x128xf32>, i32 -> vector<8x128xf32>
    %c126_i32 = arith.constant 126 : i32
    %4 = tpu.dynamic_rotate %1 by %c126_i32 dim 1 : vector<8x128xf32>, i32 -> vector<8x128xf32>
    %c2_i32_2 = arith.constant 2 : i32
    %5 = vector.broadcast %c2_i32_2 : i32 to vector<8x128xi32>
    %6 = arith.cmpi slt, %2, %5 : vector<8x128xi32>
    %cst = arith.constant 0.000000e+00 : f32
    %7 = vector.broadcast %cst : f32 to vector<8x128xf32>
    %8 = arith.select %6, %7, %3 : vector<8x128xi1>, vector<8x128xf32>
    %c126_i32_3 = arith.constant 126 : i32
    %9 = vector.broadcast %c126_i32_3 : i32 to vector<8x128xi32>
    %10 = arith.cmpi sge, %2, %9 : vector<8x128xi32>
    %cst_4 = arith.constant 0.000000e+00 : f32
    %11 = vector.broadcast %cst_4 : f32 to vector<8x128xf32>
    %12 = arith.select %10, %11, %4 : vector<8x128xi1>, vector<8x128xf32>
    %c0_5 = arith.constant 0 : index
    %c0_6 = arith.constant 0 : index
    %c0_7 = arith.constant 0 : index
    %13 = vector.load %arg3[%c0_5, %c0_6, %c0_7] : memref<3x8x8xf32, #tpu.memory_space<vmem>>, vector<1x8x8xf32>
    %14 = vector.shape_cast %13 : vector<1x8x8xf32> to vector<8x8xf32>
    %cst_8 = arith.constant dense<0.000000e+00> : vector<8x128xf32>
    %15 = tpu.matmul %14, %8, %cst_8 {dimension_numbers = #tpu.dot_dimension_numbers<[1], [0], [0], [1], [0, 0, 1, 1], [], []>} : vector<8x8xf32>, vector<8x128xf32>, vector<8x128xf32> -> vector<8x128xf32>
    %c1 = arith.constant 1 : index
    %c0_9 = arith.constant 0 : index
    %c0_10 = arith.constant 0 : index
    %16 = vector.load %arg3[%c1, %c0_9, %c0_10] : memref<3x8x8xf32, #tpu.memory_space<vmem>>, vector<1x8x8xf32>
    %17 = vector.shape_cast %16 : vector<1x8x8xf32> to vector<8x8xf32>
    %cst_11 = arith.constant dense<0.000000e+00> : vector<8x128xf32>
    %18 = tpu.matmul %17, %1, %cst_11 {dimension_numbers = #tpu.dot_dimension_numbers<[1], [0], [0], [1], [0, 0, 1, 1], [], []>} : vector<8x8xf32>, vector<8x128xf32>, vector<8x128xf32> -> vector<8x128xf32>
    %19 = arith.addf %15, %18 : vector<8x128xf32>
    %c2 = arith.constant 2 : index
    %c0_12 = arith.constant 0 : index
    %c0_13 = arith.constant 0 : index
    %20 = vector.load %arg3[%c2, %c0_12, %c0_13] : memref<3x8x8xf32, #tpu.memory_space<vmem>>, vector<1x8x8xf32>
    %21 = vector.shape_cast %20 : vector<1x8x8xf32> to vector<8x8xf32>
    %cst_14 = arith.constant dense<0.000000e+00> : vector<8x128xf32>
    %22 = tpu.matmul %21, %12, %cst_14 {dimension_numbers = #tpu.dot_dimension_numbers<[1], [0], [0], [1], [0, 0, 1, 1], [], []>} : vector<8x8xf32>, vector<8x128xf32>, vector<8x128xf32> -> vector<8x128xf32>
    %23 = arith.addf %19, %22 : vector<8x128xf32>
    %c0_15 = arith.constant 0 : index
    %c0_16 = arith.constant 0 : index
    %24 = vector.load %arg4[%c0_15, %c0_16] : memref<8x1xf32, #tpu.memory_space<vmem>>, vector<8x1xf32>
    %25 = vector.broadcast %24 : vector<8x1xf32> to vector<8x128xf32>
    %26 = arith.addf %23, %25 : vector<8x128xf32>
    %27 = arith.addf %26, %1 : vector<8x128xf32>
    %cst_17 = arith.constant 0.000000e+00 : f32
    %28 = vector.broadcast %cst_17 : f32 to vector<8x128xf32>
    %29 = arith.cmpf oge, %27, %28 : vector<8x128xf32>
    %cst_18 = arith.constant 2.000000e-01 : f32
    %30 = vector.broadcast %cst_18 : f32 to vector<8x128xf32>
    %31 = arith.mulf %30, %27 : vector<8x128xf32>
    %32 = arith.select %29, %27, %31 : vector<8x128xi1>, vector<8x128xf32>
    %c0_19 = arith.constant 0 : index
    %c0_20 = arith.constant 0 : index
    %c0_21 = arith.constant 0 : index
    %33 = vector.load %arg5[%c0_19, %c0_20, %c0_21] : memref<1x8x128xf32, #tpu.memory_space<vmem>>, vector<1x8x128xf32>
    %34 = vector.shape_cast %33 : vector<1x8x128xf32> to vector<8x128xf32>
    %35 = vector.shape_cast %32 : vector<8x128xf32> to vector<1x8x128xf32>
    tpu.vector_store %arg5[%c0_19, %c0_20, %c0_21], %35 {strides = array<i32>} : memref<1x8x128xf32, #tpu.memory_space<vmem>>, vector<1x8x128xf32>,
    return
  }
  func.func @transform_0(%arg0: i32, %arg1: i32) -> (i32, i32, i32) {
    %c0_i32 = arith.constant 0 : i32
    %c0_i32_0 = arith.constant 0 : i32
    return %arg0, %c0_i32, %arg1 : i32, i32, i32
  }
  func.func @transform_1(%arg0: i32, %arg1: i32) -> (i32, i32, i32) {
    %c0_i32 = arith.constant 0 : i32
    %c0_i32_0 = arith.constant 0 : i32
    %c0_i32_1 = arith.constant 0 : i32
    %c0_i32_2 = arith.constant 0 : i32
    return %c0_i32, %c0_i32_0, %c0_i32_1 : i32, i32, i32
  }
  func.func @transform_2(%arg0: i32, %arg1: i32) -> (i32, i32) {
    %c0_i32 = arith.constant 0 : i32
    %c0_i32_0 = arith.constant 0 : i32
    %c0_i32_1 = arith.constant 0 : i32
    return %c0_i32, %c0_i32_0 : i32, i32
  }
  func.func @transform_3(%arg0: i32, %arg1: i32) -> (i32, i32, i32) {
    %c0_i32 = arith.constant 0 : i32
    %c0_i32_0 = arith.constant 0 : i32
    return %arg0, %c0_i32, %arg1 : i32, i32, i32
  }
}

</mosaic_0001>

<llo_original>
// kernel: tpu_custom_call.1
$region0: #{tpu_custom_call.1}
  #allocation0 [shape = 'u32[]', space=smem, size = 0x4, offset = 0x4, fixed_abs, tag = 'smem constant byte address 0x4 - core index']
  #allocation1 [shape = 'u32[144,128]{1,0:T(1,128)}', space=vmem, size = 0x12000, scoped, tag = 'internal scratch']
  %s0 = inlined_call_operand.hbm [shape: f32[2,8,128], index: 0, kind: input, shape index: {}]
  %s1 = inlined_call_operand.hbm [shape: f32[3,8,8], index: 1, kind: input, shape index: {}]
  %s2 = inlined_call_operand.vmem [shape: f32[8,1], index: 2, kind: input, shape index: {}]
  %s3 = inlined_call_operand.hbm [shape: f32[2,8,128], index: 3, kind: output, shape index: {}]
  %s4 = sld [smem:[#allocation0]]
  $region53: #{tpu_custom_call.1} parent=0
    _
  %s6 = ssub.s32 1, %s4
  %s7 = scalar_select 0, %s6, %s4
  $region1: #{tpu_custom_call.1} parent=0
    #allocation2 [shape = 'u8[8192]{0}', space=vmem, size = 0x2000, scoped, tag = 'input window, operand 0']
    #allocation3 [shape = 's32[2]{0}', space=sflag, size = 0x8, scoped, tag = 'scoped memory for tpu_custom_call.1']
    #allocation4 [shape = 's32[2]{0}', space=sflag, size = 0x8, scoped, tag = 'scoped memory for tpu_custom_call.1']
    #allocation5 [shape = 'u8[12288]{0}', space=vmem, size = 0x3000, scoped, tag = 'input window, operand 1, single buffered']
    #allocation6 [shape = 's32[1]{0}', space=sflag, size = 0x4, scoped, tag = 'scoped memory for tpu_custom_call.1']
    #allocation7 [shape = 'u8[8192]{0}', space=vmem, size = 0x2000, scoped, tag = 'output window, operand 0']
    %8 = vsyncpa [#allocation3], 0
    %s9 = scalar_lea.sflag [#allocation3], 1
    %10 = vsyncpa %s9, 0
    %11 = vsyncpa [#allocation6], 0
    %12 = vsyncpa [#allocation4], 0
    %s13 = scalar_lea.sflag [#allocation4], 1
    %14 = vsyncpa %s13, 0
    loop: start=0, step=1, limit=4
    $region2: #{tpu_custom_call.1} parent=1 // loop_pre_header
      _
    $region3: #{tpu_custom_call.1} parent=1 // loop_header
      %s16 = sphi 0, %s20
      %p17 = scmp.ge.s32.totalorder %s16, 4
      %s23 = sphi 0, %s35
      %s24 = sphi 0, %s31
      %s25 = sphi 0, %s23
      %s26 = sphi 0, %s24
      %s27 = sphi 0, %s25
      %s28 = sphi 0, %s26
      %s40 = sphi 0, %s42
      %s43 = sphi 0, %s40
      %s44 = sphi 0, %s43
      %s60 = sphi 0, %s44
      %s64 = sphi 0, %s64
      %s66 = sphi 0, %s64
      %s67 = sphi 0, %s66
      %s81 = sphi 0, %s67
      %s85 = sphi 0, %s85
      %s87 = sphi 0, %s85
      %s88 = sphi 0, %s87
      %s102 = sphi 0, %s88
      %s110 = sphi 0, %s112
      %s113 = sphi 0, %s110
      %s114 = sphi 0, %s113
      %s130 = sphi 0, %s114
    $region4: #{tpu_custom_call.1} parent=1 // loop_header_branch
      %19 = sbr.rel (%p17) target = $region8
    $region5: #{tpu_custom_call.1} parent=1 // loop_body
      %s21 = ssub.s32 %s16, 1
      %s22 = ssub.s32 %s16, 2
      %s29 = sadd.s32 1, %s24
      %p30 = scmp.ge.s32.totalorder %s29, 1
      %s31 = scalar_select %p30, 0, %s29
      %s32 = sadd.s32 1, %s23
      %s33 = scalar_select %p30, %s32, %s23
      %p34 = scmp.ge.s32.totalorder %s33, 2
      %s35 = scalar_select %p34, 0, %s33
      %s36 = ssub.s32 %s23, %s35
      %s37 = ssub.s32 %s24, %s31
      %s38 = sor.u32 %s36, %s37
      %p39 = scmp.eq.s32.totalorder %s38, 0
      %s41 = sadd.s32 %s40, 1
      %s42 = scalar_select %p39, %s40, %s41
      %p45 = pneg %p39
      %p46 = scmp.eq.s32.totalorder %s16, 1
      %p47 = por %p45, %p46
      %p48 = scmp.ne.s32.totalorder %s40, %s43
      %p49 = scmp.eq.s32.totalorder %s16, 0
      %p50 = por %p48, %p49
      %p51 = scmp.ne.s32.totalorder %s40, %s43
      %p52 = scmp.eq.s32.totalorder %s21, 1
      %p53 = por %p51, %p52
      %p54 = scmp.ne.s32.totalorder %s43, %s44
      %p55 = scmp.eq.s32.totalorder %s21, 0
      %p56 = por %p54, %p55
      %p57 = scmp.ne.s32.totalorder %s43, %s44
      %p58 = scmp.eq.s32.totalorder %s22, 1
      %p59 = por %p57, %p58
      %p61 = scmp.ne.s32.totalorder %s44, %s60
      %p62 = scmp.eq.s32.totalorder %s22, 0
      %p63 = por %p61, %p62
      %s65 = sadd.s32 %s64, 1
      %p68 = scmp.eq.s32.totalorder %s16, 1
      %p69 = scmp.ne.s32.totalorder %s64, %s66
      %p70 = scmp.eq.s32.totalorder %s16, 0
      %p71 = por %p69, %p70
      %p72 = scmp.ne.s32.totalorder %s64, %s66
      %p73 = scmp.eq.s32.totalorder %s21, 1
      %p74 = por %p72, %p73
      %p75 = scmp.ne.s32.totalorder %s66, %s67
      %p76 = scmp.eq.s32.totalorder %s21, 0
      %p77 = por %p75, %p76
      %p78 = scmp.ne.s32.totalorder %s66, %s67
      %p79 = scmp.eq.s32.totalorder %s22, 1
      %p80 = por %p78, %p79
      %p82 = scmp.ne.s32.totalorder %s67, %s81
      %p83 = scmp.eq.s32.totalorder %s22, 0
      %p84 = por %p82, %p83
      %s86 = sadd.s32 %s85, 1
      %p89 = scmp.eq.s32.totalorder %s16, 1
      %p90 = scmp.ne.s32.totalorder %s85, %s87
      %p91 = scmp.eq.s32.totalorder %s16, 0
      %p92 = por %p90, %p91
      %p93 = scmp.ne.s32.totalorder %s85, %s87
      %p94 = scmp.eq.s32.totalorder %s21, 1
      %p95 = por %p93, %p94
      %p96 = scmp.ne.s32.totalorder %s87, %s88
      %p97 = scmp.eq.s32.totalorder %s21, 0
      %p98 = por %p96, %p97
      %p99 = scmp.ne.s32.totalorder %s87, %s88
      %p100 = scmp.eq.s32.totalorder %s22, 1
      %p101 = por %p99, %p100
      %p103 = scmp.ne.s32.totalorder %s88, %s102
      %p104 = scmp.eq.s32.totalorder %s22, 0
      %p105 = por %p103, %p104
      %s106 = ssub.s32 %s23, %s35
      %s107 = ssub.s32 %s24, %s31
      %s108 = sor.u32 %s106, %s107
      %p109 = scmp.eq.s32.totalorder %s108, 0
      %s111 = sadd.s32 %s110, 1
      %s112 = scalar_select %p109, %s110, %s111
      %p115 = pneg %p109
      %p116 = scmp.eq.s32.totalorder %s16, 1
      %p117 = por %p115, %p116
      %p118 = scmp.ne.s32.totalorder %s110, %s113
      %p119 = scmp.eq.s32.totalorder %s16, 0
      %p120 = por %p118, %p119
      %p121 = scmp.ne.s32.totalorder %s110, %s113
      %p122 = scmp.eq.s32.totalorder %s21, 1
      %p123 = por %p121, %p122
      %p124 = scmp.ne.s32.totalorder %s113, %s114
      %p125 = scmp.eq.s32.totalorder %s21, 0
      %p126 = por %p124, %p125
      %p127 = scmp.ne.s32.totalorder %s113, %s114
      %p128 = scmp.eq.s32.totalorder %s22, 1
      %p129 = por %p127, %p128
      %p131 = scmp.ne.s32.totalorder %s114, %s130
      %p132 = scmp.eq.s32.totalorder %s22, 0
      %p133 = por %p131, %p132
      %p134 = scmp.le.s32.totalorder 1, %s16
      %p135 = scmp.lt.s32.totalorder %s16, 3
      %p136 = pnand %p134, %p135
      %p137 = pneg %p136
      // Predicated region
      $region9: #{tpu_custom_call.1} parent=5 // pred_check
        _
      $region10: #{tpu_custom_call.1} parent=5 // pred_check_branch
        %139 = sbr.rel (%p136) target = $region12
      $region11: #{tpu_custom_call.1} parent=5 // pred_region
        %s140 = ssub.s32 %s16, 1
        // Predicated region
        $region13: #{tpu_custom_call.1} parent=11 // pred_check
          %p141 = pneg %p77
        $region14: #{tpu_custom_call.1} parent=11 // pred_check_branch
          %143 = sbr.rel (%p141) target = $region16
        $region15: #{tpu_custom_call.1} parent=11 // pred_region
          %s145 = ssub.s32 384, 384
          %146 = vsyncadd [#allocation6], %s145
          %s147 = sshll.u32 [#allocation5], 4
          %s148 = int_to_ptr.vmem [resolvable:$true] %s147
          %153 = dma.hbm_to_vmem [thread:$0]  %s1, 384, %s148, [#allocation6], 128, 128, 8
        $region16: #{tpu_custom_call.1} parent=11 // pred_fallthru
          _
        // Predicated region
        $region17: #{tpu_custom_call.1} parent=11 // pred_check
          %p154 = pneg %p98
        $region18: #{tpu_custom_call.1} parent=11 // pred_check_branch
          %156 = sbr.rel (%p154) target = $region20
        $region19: #{tpu_custom_call.1} parent=11 // pred_region
          _
        $region20: #{tpu_custom_call.1} parent=11 // pred_fallthru
          _
      $region12: #{tpu_custom_call.1} parent=5 // pred_fallthru
        _
      %p157 = scmp.lt.s32.totalorder %s16, 2
      // Predicated region
      $region21: #{tpu_custom_call.1} parent=5 // pred_check
        %p158 = pneg %p157
      $region22: #{tpu_custom_call.1} parent=5 // pred_check_branch
        %160 = sbr.rel (%p158) target = $region24
      $region23: #{tpu_custom_call.1} parent=5 // pred_region
        // Predicated region
        $region25: #{tpu_custom_call.1} parent=23 // pred_check
          %p161 = pneg %p50
        $region26: #{tpu_custom_call.1} parent=23 // pred_check_branch
          %163 = sbr.rel (%p161) target = $region28
        $region27: #{tpu_custom_call.1} parent=23 // pred_region
          %s164 = sand.u32 %s40, 1
          %s165 = scalar_lea.sflag [#allocation3], %s164
          %s166 = sand.u32 %s40, 1
          %s167 = smul.addr %s166, 8
          %s168 = scalar_lea.vmem [#allocation2], %s167
          %s170 = ssub.s32 128, 128
          %171 = vsyncadd %s165, %s170
          %s172 = sadd.s32 %s24, %s23
          %s173 = smul.addr %s172, 128
          %s174 = scalar_lea.hbm %s0, %s173
          %s176 = sshll.u32 %s168, 4
          %s177 = int_to_ptr.vmem [resolvable:$true] %s176
          %179 = dma.hbm_to_vmem [thread:$0]  %s174, 128, %s177, %s165
        $region28: #{tpu_custom_call.1} parent=23 // pred_fallthru
          _
      $region24: #{tpu_custom_call.1} parent=5 // pred_fallthru
        _
      %p180 = scmp.le.s32.totalorder 1, %s16
      %p181 = scmp.lt.s32.totalorder %s16, 3
      %p182 = pnand %p180, %p181
      %p183 = pneg %p182
      // Predicated region
      $region29: #{tpu_custom_call.1} parent=5 // pred_check
        _
      $region30: #{tpu_custom_call.1} parent=5 // pred_check_branch
        %185 = sbr.rel (%p182) target = $region32
      $region31: #{tpu_custom_call.1} parent=5 // pred_region
        %s186 = ssub.s32 %s16, 1
        %s187 = sand.u32 %s43, 1
        %s188 = scalar_lea.sflag [#allocation3], %s187
        %s189 = sand.u32 %s43, 1
        %s190 = smul.addr %s189, 8
        %s191 = scalar_lea.vmem [#allocation2], %s190
        // Predicated region
        $region33: #{tpu_custom_call.1} parent=31 // pred_check
          %p192 = pneg %p56
        $region34: #{tpu_custom_call.1} parent=31 // pred_check_branch
          %194 = sbr.rel (%p192) target = $region36
        $region35: #{tpu_custom_call.1} parent=31 // pred_region
          %195 = dma.done %s188, 128
        $region36: #{tpu_custom_call.1} parent=31 // pred_fallthru
          _
        // Predicated region
        $region37: #{tpu_custom_call.1} parent=31 // pred_check
          %p196 = pneg %p77
        $region38: #{tpu_custom_call.1} parent=31 // pred_check_branch
          %198 = sbr.rel (%p196) target = $region40
        $region39: #{tpu_custom_call.1} parent=31 // pred_region
          %199 = dma.done [#allocation6], 384
        $region40: #{tpu_custom_call.1} parent=31 // pred_fallthru
          _
        %s200 = sand.u32 %s43, 1
        %s201 = scalar_lea.sflag [#allocation3], %s200
        %s202 = sand.u32 %s43, 1
        %s203 = smul.addr %s202, 8
        %s204 = scalar_lea.vmem [#allocation2], %s203
        %p205 = pneg %p56
        %p206 = pneg %p53
        %p207 = pneg %p77
        %p208 = pneg %p74
        %p209 = pneg %p98
        %p210 = pneg %p95
        %p211 = pneg %p126
        %p212 = pneg %p123
        %s213 = sand.u32 %s113, 1
        %s214 = scalar_lea.sflag [#allocation4], %s213
        %s215 = sand.u32 %s113, 1
        %s216 = smul.addr %s215, 8
        %s217 = scalar_lea.vmem [#allocation7], %s216
        %v218 = vld [vmem:[%s191] sm:$0xff]
        %v219 = vlaneseq
        %v220 = vand.u32 %v219, 127
        %221 = vrot.lane.b32.xlu0 %v218, 2
        %v222 = vpop.permute.xlu0 %221
        %223 = vrot.lane.b32.xlu0 %v218, 126
        %v224 = vpop.permute.xlu0 %223
        %vm225 = vcmp.lt.s32.totalorder %v220, 2
        %v226 = vsel %vm225, 0.0, %v222
        %vm227 = vcmp.ge.s32.totalorder %v220, 126
        %v228 = vsel %vm227, 0.0, %v224
        %v229 = vld [vmem:[#allocation5] sm:$0xff]
        %s230 = scalar_lea.vmem [#allocation5], 8
        %v231 = vld [vmem:[%s230] sm:$0xff]
        %vm232 = vcmask 64512
        %v234 = vsel %vm232, %v231, 0
        %236 = vmatprep.subr.mxu0 0.0
        %237 = vmatpush1.msra.mxu0 %v218
        %238 = vmatprep.subr.mxu0 0.0
        %239 = vmatpush1.msra.mxu0 0.0
        %240 = vmatprep.subr.mxu0 0.0
        %241 = vmatpush1.msra.mxu0 0.0
        %242 = vmatprep.subr.mxu0 0.0
        %243 = vmatpush1.msra.mxu0 0.0
        %244 = vmatprep.subr.mxu0 0.0
        %245 = vmatpush1.msra.mxu0 0.0
        %246 = vmatprep.subr.mxu0 0.0
        %247 = vmatpush1.msra.mxu0 0.0
        %248 = vmatprep.subr.mxu0 0.0
        %249 = vmatpush1.msra.mxu0 0.0
        %250 = vmatprep.subr.mxu0 0.0
        %251 = vmatpush1.msra.mxu0 0.0
        %252 = vmatprep.subr.mxu0 0.0
        %253 = vmatpush1.msra.mxu0 0.0
        %254 = vmatprep.subr.mxu0 0.0
        %255 = vmatpush1.msra.mxu0 0.0
        %256 = vmatprep.subr.mxu0 0.0
        %257 = vmatpush1.msra.mxu0 0.0
        %258 = vmatprep.subr.mxu0 0.0
        %259 = vmatpush1.msra.mxu0 0.0
        %260 = vmatprep.subr.mxu0 0.0
        %261 = vmatpush1.msra.mxu0 0.0
        %262 = vmatprep.subr.mxu0 0.0
        %263 = vmatpush1.msra.mxu0 0.0
        %264 = vmatprep.subr.mxu0 0.0
        %265 = vmatpush1.msra.mxu0 0.0
        %266 = vmatprep.subr.mxu0 0.0
        %267 = vmatpush1.msra.mxu0 0.0
        %268 = vmatprep.subr.mxu0 0.0
        %269 = vmatpush1.msra.mxu0 0.0
        %270 = vmatprep.subr.mxu0 0.0
        %271 = vmatpush1.msra.mxu0 0.0
        %272 = vmatprep.subr.mxu0 0.0
        %273 = vmatpush1.msra.mxu0 0.0
        %274 = vmatprep.subr.mxu0 0.0
        %275 = vmatpush1.msra.mxu0 0.0
        %276 = vmatprep.subr.mxu0 0.0
        %277 = vmatpush1.msra.mxu0 0.0
        %278 = vmatprep.subr.mxu0 0.0
        %279 = vmatpush1.msra.mxu0 0.0
        %280 = vmatprep.subr.mxu0 0.0
        %281 = vmatpush1.msra.mxu0 0.0
        %282 = vmatprep.subr.mxu0 0.0
        %283 = vmatpush1.msra.mxu0 0.0
        %284 = vmatprep.subr.mxu0 0.0
        %285 = vmatpush1.msra.mxu0 0.0
        %286 = vmatprep.subr.mxu0 0.0
        %287 = vmatpush1.msra.mxu0 0.0
        %288 = vmatprep.subr.mxu0 0.0
        %289 = vmatpush1.msra.mxu0 0.0
        %290 = vmatprep.subr.mxu0 0.0
        %291 = vmatpush1.msra.mxu0 0.0
        %292 = vmatprep.subr.mxu0 0.0
        %293 = vmatpush1.msra.mxu0 0.0
        %294 = vmatprep.subr.mxu0 0.0
        %295 = vmatpush1.msra.mxu0 0.0
        %296 = vmatprep.subr.mxu0 0.0
        %297 = vmatpush1.msra.mxu0 0.0
        %298 = vmatprep.subr.mxu0 0.0
        %299 = vmatpush1.msra.mxu0 0.0
        %300 = vmatprep.mubr.f32.mxu0 0.0
        %301 = vmatmul.mubr.f32.gmra.mrb[0].mxu0 %v234
        %v302 = vpop.f32.mrb[0].mxu0
        %v303 = vadd.f32 0.0, %v302
        %v304 = vpop.f32.mrb[0].mxu0
        %305 = vdwg.mxu0
        %v307 = vsel %vm232, %v229, 0
        %309 = vmatprep.subr.mxu0 0.0
        %310 = vmatpush1.msra.mxu0 %v226
        %311 = vmatprep.subr.mxu0 0.0
        %312 = vmatpush1.msra.mxu0 0.0
        %313 = vmatprep.subr.mxu0 0.0
        %314 = vmatpush1.msra.mxu0 0.0
        %315 = vmatprep.subr.mxu0 0.0
        %316 = vmatpush1.msra.mxu0 0.0
        %317 = vmatprep.subr.mxu0 0.0
        %318 = vmatpush1.msra.mxu0 0.0
        %319 = vmatprep.subr.mxu0 0.0
        %320 = vmatpush1.msra.mxu0 0.0
        %321 = vmatprep.subr.mxu0 0.0
        %322 = vmatpush1.msra.mxu0 0.0
        %323 = vmatprep.subr.mxu0 0.0
        %324 = vmatpush1.msra.mxu0 0.0
        %325 = vmatprep.subr.mxu0 0.0
        %326 = vmatpush1.msra.mxu0 0.0
        %327 = vmatprep.subr.mxu0 0.0
        %328 = vmatpush1.msra.mxu0 0.0
        %329 = vmatprep.subr.mxu0 0.0
        %330 = vmatpush1.msra.mxu0 0.0
        %331 = vmatprep.subr.mxu0 0.0
        %332 = vmatpush1.msra.mxu0 0.0
        %333 = vmatprep.subr.mxu0 0.0
        %334 = vmatpush1.msra.mxu0 0.0
        %335 = vmatprep.subr.mxu0 0.0
        %336 = vmatpush1.msra.mxu0 0.0
        %337 = vmatprep.subr.mxu0 0.0
        %338 = vmatpush1.msra.mxu0 0.0
        %339 = vmatprep.subr.mxu0 0.0
        %340 = vmatpush1.msra.mxu0 0.0
        %341 = vmatprep.subr.mxu0 0.0
        %342 = vmatpush1.msra.mxu0 0.0
        %343 = vmatprep.subr.mxu0 0.0
        %344 = vmatpush1.msra.mxu0 0.0
        %345 = vmatprep.subr.mxu0 0.0
        %346 = vmatpush1.msra.mxu0 0.0
        %347 = vmatprep.subr.mxu0 0.0
        %348 = vmatpush1.msra.mxu0 0.0
        %349 = vmatprep.subr.mxu0 0.0
        %350 = vmatpush1.msra.mxu0 0.0
        %351 = vmatprep.subr.mxu0 0.0
        %352 = vmatpush1.msra.mxu0 0.0
        %353 = vmatprep.subr.mxu0 0.0
        %354 = vmatpush1.msra.mxu0 0.0
        %355 = vmatprep.subr.mxu0 0.0
        %356 = vmatpush1.msra.mxu0 0.0
        %357 = vmatprep.subr.mxu0 0.0
        %358 = vmatpush1.msra.mxu0 0.0
        %359 = vmatprep.subr.mxu0 0.0
        %360 = vmatpush1.msra.mxu0 0.0
        %361 = vmatprep.subr.mxu0 0.0
        %362 = vmatpush1.msra.mxu0 0.0
        %363 = vmatprep.subr.mxu0 0.0
        %364 = vmatpush1.msra.mxu0 0.0
        %365 = vmatprep.subr.mxu0 0.0
        %366 = vmatpush1.msra.mxu0 0.0
        %367 = vmatprep.subr.mxu0 0.0
        %368 = vmatpush1.msra.mxu0 0.0
        %369 = vmatprep.subr.mxu0 0.0
        %370 = vmatpush1.msra.mxu0 0.0
        %371 = vmatprep.subr.mxu0 0.0
        %372 = vmatpush1.msra.mxu0 0.0
        %373 = vmatprep.mubr.f32.mxu0 0.0
        %374 = vmatmul.mubr.f32.gmra.mrb[0].mxu0 %v307
        %v375 = vpop.f32.mrb[0].mxu0
        %v376 = vadd.f32 %v303, %v375
        %v377 = vpop.f32.mrb[0].mxu0
        %378 = vdwg.mxu0
        %s379 = scalar_lea.vmem [#allocation5], 16
        %v380 = vld [vmem:[%s379] sm:$0xff]
        %v382 = vsel %vm232, %v380, 0
        %384 = vmatprep.subr.mxu0 0.0
        %385 = vmatpush1.msra.mxu0 %v228
        %386 = vmatprep.subr.mxu0 0.0
        %387 = vmatpush1.msra.mxu0 0.0
        %388 = vmatprep.subr.mxu0 0.0
        %389 = vmatpush1.msra.mxu0 0.0
        %390 = vmatprep.subr.mxu0 0.0
        %391 = vmatpush1.msra.mxu0 0.0
        %392 = vmatprep.subr.mxu0 0.0
        %393 = vmatpush1.msra.mxu0 0.0
        %394 = vmatprep.subr.mxu0 0.0
        %395 = vmatpush1.msra.mxu0 0.0
        %396 = vmatprep.subr.mxu0 0.0
        %397 = vmatpush1.msra.mxu0 0.0
        %398 = vmatprep.subr.mxu0 0.0
        %399 = vmatpush1.msra.mxu0 0.0
        %400 = vmatprep.subr.mxu0 0.0
        %401 = vmatpush1.msra.mxu0 0.0
        %402 = vmatprep.subr.mxu0 0.0
        %403 = vmatpush1.msra.mxu0 0.0
        %404 = vmatprep.subr.mxu0 0.0
        %405 = vmatpush1.msra.mxu0 0.0
        %406 = vmatprep.subr.mxu0 0.0
        %407 = vmatpush1.msra.mxu0 0.0
        %408 = vmatprep.subr.mxu0 0.0
        %409 = vmatpush1.msra.mxu0 0.0
        %410 = vmatprep.subr.mxu0 0.0
        %411 = vmatpush1.msra.mxu0 0.0
        %412 = vmatprep.subr.mxu0 0.0
        %413 = vmatpush1.msra.mxu0 0.0
        %414 = vmatprep.subr.mxu0 0.0
        %415 = vmatpush1.msra.mxu0 0.0
        %416 = vmatprep.subr.mxu0 0.0
        %417 = vmatpush1.msra.mxu0 0.0
        %418 = vmatprep.subr.mxu0 0.0
        %419 = vmatpush1.msra.mxu0 0.0
        %420 = vmatprep.subr.mxu0 0.0
        %421 = vmatpush1.msra.mxu0 0.0
        %422 = vmatprep.subr.mxu0 0.0
        %423 = vmatpush1.msra.mxu0 0.0
        %424 = vmatprep.subr.mxu0 0.0
        %425 = vmatpush1.msra.mxu0 0.0
        %426 = vmatprep.subr.mxu0 0.0
        %427 = vmatpush1.msra.mxu0 0.0
        %428 = vmatprep.subr.mxu0 0.0
        %429 = vmatpush1.msra.mxu0 0.0
        %430 = vmatprep.subr.mxu0 0.0
        %431 = vmatpush1.msra.mxu0 0.0
        %432 = vmatprep.subr.mxu0 0.0
        %433 = vmatpush1.msra.mxu0 0.0
        %434 = vmatprep.subr.mxu0 0.0
        %435 = vmatpush1.msra.mxu0 0.0
        %436 = vmatprep.subr.mxu0 0.0
        %437 = vmatpush1.msra.mxu0 0.0
        %438 = vmatprep.subr.mxu0 0.0
        %439 = vmatpush1.msra.mxu0 0.0
        %440 = vmatprep.subr.mxu0 0.0
        %441 = vmatpush1.msra.mxu0 0.0
        %442 = vmatprep.subr.mxu0 0.0
        %443 = vmatpush1.msra.mxu0 0.0
        %444 = vmatprep.subr.mxu0 0.0
        %445 = vmatpush1.msra.mxu0 0.0
        %446 = vmatprep.subr.mxu0 0.0
        %447 = vmatpush1.msra.mxu0 0.0
        %448 = vmatprep.mubr.f32.mxu0 0.0
        %449 = vmatmul.mubr.f32.gmra.mrb[0].mxu0 %v382
        %v450 = vpop.f32.mrb[0].mxu0
        %v451 = vadd.f32 0.0, %v450
        %v452 = vpop.f32.mrb[0].mxu0
        %453 = vdwg.mxu0
        %v454 = vadd.f32 %v376, %v451
        %v455 = vld [vmem:[%s2] sm:$0xff]
        %457 = vset.pattern.permute.xlu0 0
        %458 = vperm.xlu0 %457, %v455
        %v459 = vpop.permute.xlu0 %458
        %v461 = vadd.f32 %v454, %v459
        %v462 = vadd.f32 %v461, %v218
        %vm463 = vcmp.ge.f32.partialorder %v462, 0.0
        %v464 = vmul.f32 %v462, 0.2
        %v465 = vsel %vm463, %v462, %v464
        %466 = vst [vmem:[%s217] sm:$0xff] %v465
        %s467 = sand.u32 %s113, 1
        %s468 = scalar_lea.sflag [#allocation4], %s467
        %s469 = sand.u32 %s113, 1
        %s470 = smul.addr %s469, 8
        %s471 = scalar_lea.vmem [#allocation7], %s470
        // Predicated region
        $region41: #{tpu_custom_call.1} parent=31 // pred_check
          %p472 = pneg %p123
        $region42: #{tpu_custom_call.1} parent=31 // pred_check_branch
          %474 = sbr.rel (%p472) target = $region44
        $region43: #{tpu_custom_call.1} parent=31 // pred_region
          %s476 = ssub.s32 128, 128
          %477 = vsyncadd %s468, %s476
          %s478 = sadd.s32 %s26, %s25
          %s479 = smul.addr %s478, 128
          %s480 = scalar_lea.hbm %s3, %s479
          %s482 = sshll.u32 %s471, 4
          %s483 = int_to_ptr.vmem [resolvable:$true] %s482
          %485 = dma.vmem_to_hbm [thread:$0]  %s483, 128, %s480, %s468
        $region44: #{tpu_custom_call.1} parent=31 // pred_fallthru
          _
      $region32: #{tpu_custom_call.1} parent=5 // pred_fallthru
        _
      %p486 = scmp.le.s32.totalorder 2, %s16
      // Predicated region
      $region45: #{tpu_custom_call.1} parent=5 // pred_check
        %p487 = pneg %p486
      $region46: #{tpu_custom_call.1} parent=5 // pred_check_branch
        %489 = sbr.rel (%p487) target = $region48
      $region47: #{tpu_custom_call.1} parent=5 // pred_region
        %s490 = ssub.s32 %s16, 2
        // Predicated region
        $region49: #{tpu_custom_call.1} parent=47 // pred_check
          %p491 = pneg %p129
        $region50: #{tpu_custom_call.1} parent=47 // pred_check_branch
          %493 = sbr.rel (%p491) target = $region52
        $region51: #{tpu_custom_call.1} parent=47 // pred_region
          %s494 = sand.u32 %s114, 1
          %s495 = scalar_lea.sflag [#allocation4], %s494
          %s496 = sand.u32 %s114, 1
          %s497 = smul.addr %s496, 8
          %s498 = scalar_lea.vmem [#allocation7], %s497
          %499 = dma.done %s495, 128
        $region52: #{tpu_custom_call.1} parent=47 // pred_fallthru
          _
      $region48: #{tpu_custom_call.1} parent=5 // pred_fallthru
        _
    $region6: #{tpu_custom_call.1} parent=1 // loop_footer
      %s20 = sadd.s32 1, %s16
    $region7: #{tpu_custom_call.1} parent=1 // loop_footer_branch
      %15 = sbr.rel target = $region3
    $region8: #{tpu_custom_call.1} parent=1 // loop_exit
      _
    %500 = vsyncpa [#allocation3], 1
    %s501 = scalar_lea.sflag [#allocation3], 1
    %502 = vsyncpa %s501, 1
    %503 = vsyncpa [#allocation6], 1
    %504 = vsyncpa [#allocation4], 1
    %s505 = scalar_lea.sflag [#allocation4], 1
    %506 = vsyncpa %s505, 1

</llo_original>
